<compile_context>
chip_gen: v7x
topology: tpu7x:2x2x1
jax: 0.10.0
libtpu: 0.0.40
codegen_flags: <defaults>
</compile_context>

<pallas_src>
import numpy as np

import jax
import jax.numpy as jnp
from jax import lax
from jax.experimental import pallas as pl
from jax.experimental.pallas import tpu as pltpu


# ----------------------------------------------------------------------------
# Kernels
# ----------------------------------------------------------------------------
def _xxt_kernel_inplace(ii_ref, jj_ref, a_ref, b_ref, o_ref):
    """f32 output: accumulate directly into the resident output block."""
    del ii_ref, jj_ref  # only used by the index_maps
    k = pl.program_id(1)

    # Contract the feature (last) dim of both row strips on the MXU; no
    # in-kernel transpose is materialized.
    prod = lax.dot_general(
        a_ref[...], b_ref[...],
        dimension_numbers=(((1,), (1,)), ((), ())),
        preferred_element_type=jnp.float32,
    )

    @pl.when(k == 0)
    def _():
        o_ref[...] = prod

    @pl.when(k > 0)
    def _():
        o_ref[...] += prod


def _xxt_kernel_scratch(ii_ref, jj_ref, a_ref, b_ref, o_ref, acc_ref):
    """Non-f32 output: accumulate in an f32 VMEM scratch, cast on last k."""
    del ii_ref, jj_ref
    k = pl.program_id(1)

    prod = lax.dot_general(
        a_ref[...], b_ref[...],
        dimension_numbers=(((1,), (1,)), ((), ())),
        preferred_element_type=jnp.float32,
    )

    @pl.when(k == 0)
    def _():
        acc_ref[...] = prod

    @pl.when(k > 0)
    def _():
        acc_ref[...] += prod

    @pl.when(k == pl.num_programs(1) - 1)
    def _():
        o_ref[...] = acc_ref[...].astype(o_ref.dtype)


# ----------------------------------------------------------------------------
# Wrapper
# ----------------------------------------------------------------------------
def _round_up(x, m):
    return ((x + m - 1) // m) * m


def _vmem_capacity_bytes():
    """Per-generation VMEM capacity; conservative (v7x) fallback = 64 MiB."""
    try:
        cap = int(pltpu.get_tpu_info().vmem_capacity_bytes)
        if cap > 0:
            return cap
    except Exception:
        pass
    return 64 * 1024 * 1024


def linear_kernel(x, *, tile_mn=None, tile_k=None, cast_bf16=False):
    """Pallas TPU implementation of torch.matmul(x, x.t()) for 2-D x."""
    assert x.ndim == 2, "LinearKernel expects a 2-D input"
    N, D = x.shape
    out_dtype = x.dtype
    in_dtype = jnp.bfloat16 if cast_bf16 else x.dtype
    in_item = jnp.dtype(in_dtype).itemsize
    out_item = jnp.dtype(out_dtype).itemsize
    use_scratch = jnp.dtype(out_dtype) != jnp.dtype(jnp.float32)

    cap = _vmem_capacity_bytes()
    compute_budget = int(cap * 0.70)  # tiles (incl. double-buffers) fit here

    # --- square, lane-aligned M/N tile --------------------------------------
    n128 = _round_up(N, 128)
    if tile_mn is None:
        t = 128
        for cand in (512, 384, 256, 128):
            if cand > n128:
                continue                                  # bigger than input
            if cand > 128 and _round_up(N, cand) // cand < 2:
                continue                                  # single block row
            if _round_up(N, cand) - n128 > 0:
                continue                                  # extra padding
            t = cand
            break
    else:
        t = tile_mn
    Np = _round_up(N, t)
    nb = Np // t

    # --- K tile: as big as the VMEM budget allows (fewer reduction steps) ---
    def _need(t_, tk_):
        n = 2 * 2 * t_ * tk_ * in_item          # double-buffered A & B strips
        n += 2 * t_ * t_ * out_item             # double-buffered output block
        if use_scratch:
            n += t_ * t_ * 4                    # f32 accumulator scratch
        return n

    if tile_k is None:
        tk = min(_round_up(D, 128), 4096)
        while _need(t, tk) > compute_budget and tk > 128:
            tk -= 128
    else:
        tk = tile_k
    Dp = _round_up(D, tk)
    nk = Dp // tk

    # --- pad (zeros do not change x @ x.T) and optionally cast once ---------
    xp = x
    if Np != N or Dp != D:
        xp = jnp.pad(xp, ((0, Np - N), (0, Dp - D)))
    if cast_bf16:
        # Wrapper-level cast: halves HBM DMA; f32 accumulation in-kernel.
        xp = xp.astype(jnp.bfloat16)

    # --- upper-triangular block pairs (j >= i) -------------------------------
    ii_np, jj_np = np.triu_indices(nb)
    ii = jnp.asarray(ii_np, dtype=jnp.int32)
    jj = jnp.asarray(jj_np, dtype=jnp.int32)
    n_pairs = int(ii_np.size)

    grid = (n_pairs, nk)
    kernel = _xxt_kernel_scratch if use_scratch else _xxt_kernel_inplace
    scratch = [pltpu.VMEM((t, t), jnp.float32)] if use_scratch else []

    vmem_limit = int(min(cap - (4 << 20),
                         max(32 << 20, _need(t, tk) + (16 << 20))))

    cost = pl.CostEstimate(
        flops=2 * n_pairs * t * t * Dp,
        bytes_accessed=int(2 * n_pairs * t * Dp * in_item
                           + n_pairs * t * t * out_item),
        transcendentals=0,
    )

    out_padded = pl.pallas_call(
        kernel,
        out_shape=jax.ShapeDtypeStruct((Np, Np), out_dtype),
        grid_spec=pltpu.PrefetchScalarGridSpec(
            num_scalar_prefetch=2,
            grid=grid,
            in_specs=[
                # row strip of x feeding the output's row block
                pl.BlockSpec((t, tk), lambda p, k, ii_r, jj_r: (ii_r[p], k)),
                # row strip of x feeding the output's column block
                pl.BlockSpec((t, tk), lambda p, k, ii_r, jj_r: (jj_r[p], k)),
            ],
            out_specs=pl.BlockSpec(
                (t, t), lambda p, k, ii_r, jj_r: (ii_r[p], jj_r[p])),
            scratch_shapes=scratch,
        ),
        compiler_params=pltpu.CompilerParams(
            dimension_semantics=("parallel", "arbitrary"),
            vmem_limit_bytes=vmem_limit,
        ),
        cost_estimate=cost,
    )(ii, jj, xp, xp)

    # Slice away the padding and mirror the computed upper triangle onto the
    # lower triangle (the Gram matrix is symmetric).
    out = out_padded[:N, :N]
    rows = jnp.arange(N)[:, None]
    cols = jnp.arange(N)[None, :]
    return jnp.where(rows <= cols, out, out.T)


# ----------------------------------------------------------------------------
# Self-test
# ----------------------------------------------------------------------------
if __name__ == "__main__":
    key = jax.random.PRNGKey(0)

    # Small 2-D input consistent with the module: seq=8, hidden=32.
    x_small = jax.random.normal(key, (8, 32), dtype=jnp.float32)
    out_small = linear_kernel(x_small)
    jax.block_until_ready(out_small)
    ref_small = jnp.matmul(x_small, x_small.T, precision=lax.Precision.HIGHEST)
    assert out_small.shape == (8, 8)
    assert jnp.allclose(out_small, ref_small, atol=1e-4, rtol=1e-4)

    # Larger shape exercising the triangular block grid and the mirrored fill.
    k2 = jax.random.PRNGKey(1)
    x_big = jax.random.normal(k2, (512, 1024), dtype=jnp.float32)
    ref_big = jnp.matmul(x_big, x_big.T, precision=lax.Precision.HIGHEST)
    scale_big = float(jnp.maximum(1.0, jnp.max(jnp.abs(ref_big))))
    out_big = linear_kernel(x_big)
    jax.block_until_ready(out_big)
    assert out_big.shape == (512, 512)
    assert float(jnp.max(jnp.abs(out_big - ref_big))) < 1e-2 * scale_big

    # Force a multi-step K reduction to exercise the in-place accumulation.
    out_acc = linear_kernel(x_big, tile_k=256)
    jax.block_until_ready(out_acc)
    assert float(jnp.max(jnp.abs(out_acc - ref_big))) < 1e-2 * scale_big

    # Unaligned N / D: exercises zero-padding, partial blocks and mirroring.
    k3 = jax.random.PRNGKey(2)
    x_odd = jax.random.normal(k3, (300, 200), dtype=jnp.float32)
    ref_odd = jnp.matmul(x_odd, x_odd.T, precision=lax.Precision.HIGHEST)
    scale_odd = float(jnp.maximum(1.0, jnp.max(jnp.abs(ref_odd))))
    out_odd = linear_kernel(x_odd)
    jax.block_until_ready(out_odd)
    assert out_odd.shape == (300, 300)
    assert float(jnp.max(jnp.abs(out_odd - ref_odd))) < 1e-2 * scale_odd

    print("KERNEL_OK")
</pallas_src>

<mosaic_0001>
module attributes {stable_mosaic.version = 11 : i64} {
  func.func @_xxt_kernel_inplace(%arg0: i32, %arg1: i32, %arg2: memref<1xi32, #tpu.memory_space<smem>>, %arg3: memref<1xi32, #tpu.memory_space<smem>>, %arg4: memref<128x128xf32, #tpu.memory_space<vmem>>, %arg5: memref<128x128xf32, #tpu.memory_space<vmem>>, %arg6: memref<128x128xf32, #tpu.memory_space<vmem>>) attributes {dimension_semantics = [#tpu.dimension_semantics<parallel>, #tpu.dimension_semantics<arbitrary>], iteration_bounds = array<i64: 1, 1>, scalar_prefetch = 2 : i64, scratch_operands = 0 : i64, tpu.core_type = #tpu.core_type<tc>, window_params = [{transform_indices = @transform_0, window_bounds = array<i64: 128, 128>}, {transform_indices = @transform_1, window_bounds = array<i64: 128, 128>}, {transform_indices = @transform_2, window_bounds = array<i64: 128, 128>}]} {
    %c0 = arith.constant 0 : index
    %c0_0 = arith.constant 0 : index
    %0 = vector.load %arg4[%c0, %c0_0] : memref<128x128xf32, #tpu.memory_space<vmem>>, vector<128x128xf32>
    %c0_1 = arith.constant 0 : index
    %c0_2 = arith.constant 0 : index
    %1 = vector.load %arg5[%c0_1, %c0_2] : memref<128x128xf32, #tpu.memory_space<vmem>>, vector<128x128xf32>
    %cst = arith.constant dense<0.000000e+00> : vector<128x128xf32>
    %2 = tpu.matmul %0, %1, %cst {dimension_numbers = #tpu.dot_dimension_numbers<[1], [1], [0], [0], [0, 0, 1, 0], [], []>} : vector<128x128xf32>, vector<128x128xf32>, vector<128x128xf32> -> vector<128x128xf32>
    %c0_i32 = arith.constant 0 : i32
    %3 = arith.cmpi eq, %arg1, %c0_i32 : i32
    %4 = arith.extui %3 : i1 to i32
    %c0_i32_3 = arith.constant 0 : i32
    %5 = arith.cmpi ne, %4, %c0_i32_3 : i32
    scf.if %5 {
      %c0_6 = arith.constant 0 : index
      %c0_7 = arith.constant 0 : index
      %9 = vector.load %arg6[%c0_6, %c0_7] : memref<128x128xf32, #tpu.memory_space<vmem>>, vector<128x128xf32>
      tpu.vector_store %arg6[%c0_6, %c0_7], %2 {strides = array<i32>} : memref<128x128xf32, #tpu.memory_space<vmem>>, vector<128x128xf32>,
    } else {
    }
    %c0_i32_4 = arith.constant 0 : i32
    %6 = arith.cmpi sgt, %arg1, %c0_i32_4 : i32
    %7 = arith.extui %6 : i1 to i32
    %c0_i32_5 = arith.constant 0 : i32
    %8 = arith.cmpi ne, %7, %c0_i32_5 : i32
    scf.if %8 {
      %c0_6 = arith.constant 0 : index
      %c0_7 = arith.constant 0 : index
      %9 = vector.load %arg6[%c0_6, %c0_7] : memref<128x128xf32, #tpu.memory_space<vmem>>, vector<128x128xf32>
      %10 = arith.addf %9, %2 : vector<128x128xf32>
      %c0_8 = arith.constant 0 : index
      %c0_9 = arith.constant 0 : index
      %11 = vector.load %arg6[%c0_8, %c0_9] : memref<128x128xf32, #tpu.memory_space<vmem>>, vector<128x128xf32>
      tpu.vector_store %arg6[%c0_8, %c0_9], %10 {strides = array<i32>} : memref<128x128xf32, #tpu.memory_space<vmem>>, vector<128x128xf32>,
    } else {
    }
    return
  }
  func.func @transform_0(%arg0: i32, %arg1: i32, %arg2: memref<1xi32, #tpu.memory_space<smem>>, %arg3: memref<1xi32, #tpu.memory_space<smem>>) -> (i32, i32) {
    %0 = arith.index_cast %arg0 : i32 to index
    %1 = memref.load %arg2[%0] : memref<1xi32, #tpu.memory_space<smem>>
    %c0_i32 = arith.constant 0 : i32
    return %1, %arg1 : i32, i32
  }
  func.func @transform_1(%arg0: i32, %arg1: i32, %arg2: memref<1xi32, #tpu.memory_space<smem>>, %arg3: memref<1xi32, #tpu.memory_space<smem>>) -> (i32, i32) {
    %0 = arith.index_cast %arg0 : i32 to index
    %1 = memref.load %arg3[%0] : memref<1xi32, #tpu.memory_space<smem>>
    %c0_i32 = arith.constant 0 : i32
    return %1, %arg1 : i32, i32
  }
  func.func @transform_2(%arg0: i32, %arg1: i32, %arg2: memref<1xi32, #tpu.memory_space<smem>>, %arg3: memref<1xi32, #tpu.memory_space<smem>>) -> (i32, i32) {
    %0 = arith.index_cast %arg0 : i32 to index
    %1 = memref.load %arg2[%0] : memref<1xi32, #tpu.memory_space<smem>>
    %2 = arith.index_cast %arg0 : i32 to index
    %3 = memref.load %arg3[%2] : memref<1xi32, #tpu.memory_space<smem>>
    %c0_i32 = arith.constant 0 : i32
    return %1, %3 : i32, i32
  }
}

</mosaic_0001>

<llo_original>
// kernel: tpu_custom_call.1
$region0: #{tpu_custom_call.1}
  #allocation0 [shape = 'u32[]', space=smem, size = 0x4, offset = 0x4, fixed_abs, tag = 'smem constant byte address 0x4 - core index']
  #allocation1 [shape = 'u32[144,128]{1,0:T(1,128)}', space=vmem, size = 0x12000, scoped, tag = 'internal scratch']
  #allocation2 [shape = 's32[1]{0}', space=sflag, size = 0x4, scoped, tag = 'scoped memory for tpu_custom_call.1']
  #allocation3 [shape = 's32[1]{0:T(128)S(6)}', space=smem, size = 0x200, scoped, tag = 'prefetched SMEM operand 0']
  #allocation4 [shape = 's32[1]{0:T(128)S(6)}', space=smem, size = 0x200, scoped, tag = 'prefetched SMEM operand 1']
  %s0 = inlined_call_operand.<no memory space> [shape: s32[1], index: 0, kind: input, shape index: {}]
  %s1 = inlined_call_operand.<no memory space> [shape: s32[1], index: 1, kind: input, shape index: {}]
  %s2 = inlined_call_operand.hbm [shape: f32[128,128], index: 2, kind: input, shape index: {}]
  %s3 = inlined_call_operand.hbm [shape: f32[128,128], index: 3, kind: input, shape index: {}]
  %s4 = inlined_call_operand.hbm [shape: f32[128,128], index: 4, kind: output, shape index: {}]
  %s5 = sld [smem:[#allocation0]]
  $region34: #{tpu_custom_call.1} parent=0
    _
  %s7 = ssub.s32 1, %s5
  %s8 = scalar_select 0, %s7, %s5
  %9 = sst [smem:[#allocation3]] %s0
  %10 = sst [smem:[#allocation4]] %s1
  $region1: #{tpu_custom_call.1} parent=0
    #allocation5 [shape = 'u8[65536]{0}', space=vmem, size = 0x10000, scoped, tag = 'input window, operand 2, single buffered']
    #allocation6 [shape = 's32[1]{0}', space=sflag, size = 0x4, scoped, tag = 'scoped memory for tpu_custom_call.1']
    #allocation7 [shape = 's32[1]{0}', space=sflag, size = 0x4, scoped, tag = 'scoped memory for tpu_custom_call.1']
    #allocation8 [shape = 'u8[65536]{0}', space=vmem, size = 0x10000, scoped, tag = 'input window, operand 3, single buffered']
    #allocation9 [shape = 's32[1]{0}', space=sflag, size = 0x4, scoped, tag = 'scoped memory for tpu_custom_call.1']
    #allocation10 [shape = 'u8[65536]{0}', space=vmem, size = 0x10000, scoped, tag = 'output window, operand 0, single buffered']
    %11 = vsyncpa [#allocation6], 0
    %12 = vsyncpa [#allocation9], 0
    %13 = vsyncpa [#allocation7], 0
    // Predicated region
    $region2: #{tpu_custom_call.1} parent=1 // pred_check
      _
    $region3: #{tpu_custom_call.1} parent=1 // pred_check_branch
      %15 = sbr.rel (0) target = $region5
    $region4: #{tpu_custom_call.1} parent=1 // pred_region
      %s16 = sld [smem:[#allocation3]]
      %s17 = smul.u32 16, %s16
      %s19 = ssub.s32 2048, 2048
      %20 = vsyncadd [#allocation6], %s19
      %s21 = smul.addr %s17, 128
      %s22 = scalar_lea.hbm %s2, %s21
      %s23 = sshll.u32 [#allocation5], 4
      %s24 = int_to_ptr.vmem [resolvable:$true] %s23
      %29 = dma.hbm_to_vmem [thread:$0]  %s22, 2048, %s24, [#allocation6], 128, 128, 8
    $region5: #{tpu_custom_call.1} parent=1 // pred_fallthru
      _
    // Predicated region
    $region6: #{tpu_custom_call.1} parent=1 // pred_check
      _
    $region7: #{tpu_custom_call.1} parent=1 // pred_check_branch
      %31 = sbr.rel (0) target = $region9
    $region8: #{tpu_custom_call.1} parent=1 // pred_region
      %s32 = sld [smem:[#allocation4]]
      %s33 = smul.u32 16, %s32
      %s35 = ssub.s32 2048, 2048
      %36 = vsyncadd [#allocation9], %s35
      %s37 = smul.addr %s33, 128
      %s38 = scalar_lea.hbm %s3, %s37
      %s39 = sshll.u32 [#allocation8], 4
      %s40 = int_to_ptr.vmem [resolvable:$true] %s39
      %45 = dma.hbm_to_vmem [thread:$0]  %s38, 2048, %s40, [#allocation9], 128, 128, 8
    $region9: #{tpu_custom_call.1} parent=1 // pred_fallthru
      _
    // Predicated region
    $region10: #{tpu_custom_call.1} parent=1 // pred_check
      _
    $region11: #{tpu_custom_call.1} parent=1 // pred_check_branch
      %47 = sbr.rel (0) target = $region13
    $region12: #{tpu_custom_call.1} parent=1 // pred_region
      %48 = dma.done [#allocation6], 2048
    $region13: #{tpu_custom_call.1} parent=1 // pred_fallthru
      _
    // Predicated region
    $region14: #{tpu_custom_call.1} parent=1 // pred_check
      _
    $region15: #{tpu_custom_call.1} parent=1 // pred_check_branch
      %50 = sbr.rel (0) target = $region17
    $region16: #{tpu_custom_call.1} parent=1 // pred_region
      %51 = dma.done [#allocation9], 2048
    $region17: #{tpu_custom_call.1} parent=1 // pred_fallthru
      _
    %s52 = sld [smem:[#allocation3]]
    %s53 = smul.u32 16, %s52
    %s54 = sld [smem:[#allocation4]]
    %s55 = smul.u32 16, %s54
    %s56 = sld [smem:[#allocation3]]
    %s57 = sld [smem:[#allocation4]]
    %s58 = smul.u32 16, %s56
    %v59 = vld [vmem:[#allocation5] sm:$0xff]
    %v60 = vld [vmem:[#allocation5 + $0x8] sm:$0xff]
    %v61 = vld [vmem:[#allocation5 + $0x10] sm:$0xff]
    %v62 = vld [vmem:[#allocation5 + $0x18] sm:$0xff]
    %v63 = vld [vmem:[#allocation5 + $0x20] sm:$0xff]
    %v64 = vld [vmem:[#allocation5 + $0x28] sm:$0xff]
    %v65 = vld [vmem:[#allocation5 + $0x30] sm:$0xff]
    %v66 = vld [vmem:[#allocation5 + $0x38] sm:$0xff]
    %v67 = vld [vmem:[#allocation5 + $0x40] sm:$0xff]
    %v68 = vld [vmem:[#allocation5 + $0x48] sm:$0xff]
    %v69 = vld [vmem:[#allocation5 + $0x50] sm:$0xff]
    %v70 = vld [vmem:[#allocation5 + $0x58] sm:$0xff]
    %v71 = vld [vmem:[#allocation5 + $0x60] sm:$0xff]
    %v72 = vld [vmem:[#allocation5 + $0x68] sm:$0xff]
    %v73 = vld [vmem:[#allocation5 + $0x70] sm:$0xff]
    %v74 = vld [vmem:[#allocation5 + $0x78] sm:$0xff]
    %v75 = vld [vmem:[#allocation8] sm:$0xff]
    %v76 = vld [vmem:[#allocation8 + $0x8] sm:$0xff]
    %v77 = vld [vmem:[#allocation8 + $0x10] sm:$0xff]
    %v78 = vld [vmem:[#allocation8 + $0x18] sm:$0xff]
    %v79 = vld [vmem:[#allocation8 + $0x20] sm:$0xff]
    %v80 = vld [vmem:[#allocation8 + $0x28] sm:$0xff]
    %v81 = vld [vmem:[#allocation8 + $0x30] sm:$0xff]
    %v82 = vld [vmem:[#allocation8 + $0x38] sm:$0xff]
    %v83 = vld [vmem:[#allocation8 + $0x40] sm:$0xff]
    %v84 = vld [vmem:[#allocation8 + $0x48] sm:$0xff]
    %v85 = vld [vmem:[#allocation8 + $0x50] sm:$0xff]
    %v86 = vld [vmem:[#allocation8 + $0x58] sm:$0xff]
    %v87 = vld [vmem:[#allocation8 + $0x60] sm:$0xff]
    %v88 = vld [vmem:[#allocation8 + $0x68] sm:$0xff]
    %v89 = vld [vmem:[#allocation8 + $0x70] sm:$0xff]
    %v90 = vld [vmem:[#allocation8 + $0x78] sm:$0xff]
    %91 = vmatprep.subr.mxu0 0.0
    %92 = vmatpush1.xpose.msra.mxu0 %v75
    %93 = vmatprep.subr.mxu0 0.0
    %94 = vmatpush1.xpose.msra.mxu0 %v76
    %95 = vmatprep.subr.mxu0 0.0
    %96 = vmatpush1.xpose.msra.mxu0 %v77
    %97 = vmatprep.subr.mxu0 0.0
    %98 = vmatpush1.xpose.msra.mxu0 %v78
    %99 = vmatprep.subr.mxu0 0.0
    %100 = vmatpush1.xpose.msra.mxu0 %v79
    %101 = vmatprep.subr.mxu0 0.0
    %102 = vmatpush1.xpose.msra.mxu0 %v80
    %103 = vmatprep.subr.mxu0 0.0
    %104 = vmatpush1.xpose.msra.mxu0 %v81
    %105 = vmatprep.subr.mxu0 0.0
    %106 = vmatpush1.xpose.msra.mxu0 %v82
    %107 = vmatprep.subr.mxu0 0.0
    %108 = vmatpush1.xpose.msra.mxu0 %v83
    %109 = vmatprep.subr.mxu0 0.0
    %110 = vmatpush1.xpose.msra.mxu0 %v84
    %111 = vmatprep.subr.mxu0 0.0
    %112 = vmatpush1.xpose.msra.mxu0 %v85
    %113 = vmatprep.subr.mxu0 0.0
    %114 = vmatpush1.xpose.msra.mxu0 %v86
    %115 = vmatprep.subr.mxu0 0.0
    %116 = vmatpush1.xpose.msra.mxu0 %v87
    %117 = vmatprep.subr.mxu0 0.0
    %118 = vmatpush1.xpose.msra.mxu0 %v88
    %119 = vmatprep.subr.mxu0 0.0
    %120 = vmatpush1.xpose.msra.mxu0 %v89
    %121 = vmatprep.subr.mxu0 0.0
    %122 = vmatpush1.xpose.msra.mxu0 %v90
    %123 = vmatprep.subr.mxu0 0.0
    %124 = vmatpush1.xpose.msra.mxu0 0.0
    %125 = vmatprep.subr.mxu0 0.0
    %126 = vmatpush1.xpose.msra.mxu0 0.0
    %127 = vmatprep.subr.mxu0 0.0
    %128 = vmatpush1.xpose.msra.mxu0 0.0
    %129 = vmatprep.subr.mxu0 0.0
    %130 = vmatpush1.xpose.msra.mxu0 0.0
    %131 = vmatprep.subr.mxu0 0.0
    %132 = vmatpush1.xpose.msra.mxu0 0.0
    %133 = vmatprep.subr.mxu0 0.0
    %134 = vmatpush1.xpose.msra.mxu0 0.0
    %135 = vmatprep.subr.mxu0 0.0
    %136 = vmatpush1.xpose.msra.mxu0 0.0
    %137 = vmatprep.subr.mxu0 0.0
    %138 = vmatpush1.xpose.msra.mxu0 0.0
    %139 = vmatprep.subr.mxu0 0.0
    %140 = vmatpush1.xpose.msra.mxu0 0.0
    %141 = vmatprep.subr.mxu0 0.0
    %142 = vmatpush1.xpose.msra.mxu0 0.0
    %143 = vmatprep.subr.mxu0 0.0
    %144 = vmatpush1.xpose.msra.mxu0 0.0
    %145 = vmatprep.subr.mxu0 0.0
    %146 = vmatpush1.xpose.msra.mxu0 0.0
    %147 = vmatprep.subr.mxu0 0.0
    %148 = vmatpush1.xpose.msra.mxu0 0.0
    %149 = vmatprep.subr.mxu0 0.0
    %150 = vmatpush1.xpose.msra.mxu0 0.0
    %151 = vmatprep.subr.mxu0 0.0
    %152 = vmatpush1.xpose.msra.mxu0 0.0
    %153 = vmatprep.subr.mxu0 0.0
    %154 = vmatpush1.xpose.msra.mxu0 0.0
    %155 = vmatprep.mubr.f32.mxu0 0.0
    %156 = vmatmul.mubr.f32.gmra.mrb[0].mxu0 %v59
    %v157 = vpop.f32.mrb[0].mxu0
    %v158 = vadd.f32 0.0, %v157
    %v159 = vpop.f32.mrb[0].mxu0
    %160 = vmatprep.mubr.f32.mxu0 0.0
    %161 = vmatmul.mubr.f32.gmra.mrb[0].mxu0 %v60
    %v162 = vpop.f32.mrb[0].mxu0
    %v163 = vadd.f32 0.0, %v162
    %v164 = vpop.f32.mrb[0].mxu0
    %165 = vmatprep.mubr.f32.mxu0 0.0
    %166 = vmatmul.mubr.f32.gmra.mrb[0].mxu0 %v61
    %v167 = vpop.f32.mrb[0].mxu0
    %v168 = vadd.f32 0.0, %v167
    %v169 = vpop.f32.mrb[0].mxu0
    %170 = vmatprep.mubr.f32.mxu0 0.0
    %171 = vmatmul.mubr.f32.gmra.mrb[0].mxu0 %v62
    %v172 = vpop.f32.mrb[0].mxu0
    %v173 = vadd.f32 0.0, %v172
    %v174 = vpop.f32.mrb[0].mxu0
    %175 = vmatprep.mubr.f32.mxu0 0.0
    %176 = vmatmul.mubr.f32.gmra.mrb[0].mxu0 %v63
    %v177 = vpop.f32.mrb[0].mxu0
    %v178 = vadd.f32 0.0, %v177
    %v179 = vpop.f32.mrb[0].mxu0
    %180 = vmatprep.mubr.f32.mxu0 0.0
    %181 = vmatmul.mubr.f32.gmra.mrb[0].mxu0 %v64
    %v182 = vpop.f32.mrb[0].mxu0
    %v183 = vadd.f32 0.0, %v182
    %v184 = vpop.f32.mrb[0].mxu0
    %185 = vmatprep.mubr.f32.mxu0 0.0
    %186 = vmatmul.mubr.f32.gmra.mrb[0].mxu0 %v65
    %v187 = vpop.f32.mrb[0].mxu0
    %v188 = vadd.f32 0.0, %v187
    %v189 = vpop.f32.mrb[0].mxu0
    %190 = vmatprep.mubr.f32.mxu0 0.0
    %191 = vmatmul.mubr.f32.gmra.mrb[0].mxu0 %v66
    %v192 = vpop.f32.mrb[0].mxu0
    %v193 = vadd.f32 0.0, %v192
    %v194 = vpop.f32.mrb[0].mxu0
    %195 = vmatprep.mubr.f32.mxu0 0.0
    %196 = vmatmul.mubr.f32.gmra.mrb[0].mxu0 %v67
    %v197 = vpop.f32.mrb[0].mxu0
    %v198 = vadd.f32 0.0, %v197
    %v199 = vpop.f32.mrb[0].mxu0
    %200 = vmatprep.mubr.f32.mxu0 0.0
    %201 = vmatmul.mubr.f32.gmra.mrb[0].mxu0 %v68
    %v202 = vpop.f32.mrb[0].mxu0
    %v203 = vadd.f32 0.0, %v202
    %v204 = vpop.f32.mrb[0].mxu0
    %205 = vmatprep.mubr.f32.mxu0 0.0
    %206 = vmatmul.mubr.f32.gmra.mrb[0].mxu0 %v69
    %v207 = vpop.f32.mrb[0].mxu0
    %v208 = vadd.f32 0.0, %v207
    %v209 = vpop.f32.mrb[0].mxu0
    %210 = vmatprep.mubr.f32.mxu0 0.0
    %211 = vmatmul.mubr.f32.gmra.mrb[0].mxu0 %v70
    %v212 = vpop.f32.mrb[0].mxu0
    %v213 = vadd.f32 0.0, %v212
    %v214 = vpop.f32.mrb[0].mxu0
    %215 = vmatprep.mubr.f32.mxu0 0.0
    %216 = vmatmul.mubr.f32.gmra.mrb[0].mxu0 %v71
    %v217 = vpop.f32.mrb[0].mxu0
    %v218 = vadd.f32 0.0, %v217
    %v219 = vpop.f32.mrb[0].mxu0
    %220 = vmatprep.mubr.f32.mxu0 0.0
    %221 = vmatmul.mubr.f32.gmra.mrb[0].mxu0 %v72
    %v222 = vpop.f32.mrb[0].mxu0
    %v223 = vadd.f32 0.0, %v222
    %v224 = vpop.f32.mrb[0].mxu0
    %225 = vmatprep.mubr.f32.mxu0 0.0
    %226 = vmatmul.mubr.f32.gmra.mrb[0].mxu0 %v73
    %v227 = vpop.f32.mrb[0].mxu0
    %v228 = vadd.f32 0.0, %v227
    %v229 = vpop.f32.mrb[0].mxu0
    %230 = vmatprep.mubr.f32.mxu0 0.0
    %231 = vmatmul.mubr.f32.gmra.mrb[0].mxu0 %v74
    %v232 = vpop.f32.mrb[0].mxu0
    %v233 = vadd.f32 0.0, %v232
    %v234 = vpop.f32.mrb[0].mxu0
    %235 = vdwg.mxu0
    %p236 = scmp.eq.s32.totalorder 0, 0
    // Predicated region
    $region18: #{tpu_custom_call.1} parent=1 // pred_check
      %p237 = pneg %p236
    $region19: #{tpu_custom_call.1} parent=1 // pred_check_branch
      %239 = sbr.rel (%p237) target = $region21
    $region20: #{tpu_custom_call.1} parent=1 // pred_region
      %240 = vst [vmem:[#allocation10] sm:$0xff] %v158
      %241 = vst [vmem:[#allocation10 + $0x8] sm:$0xff] %v163
      %242 = vst [vmem:[#allocation10 + $0x10] sm:$0xff] %v168
      %243 = vst [vmem:[#allocation10 + $0x18] sm:$0xff] %v173
      %244 = vst [vmem:[#allocation10 + $0x20] sm:$0xff] %v178
      %245 = vst [vmem:[#allocation10 + $0x28] sm:$0xff] %v183
      %246 = vst [vmem:[#allocation10 + $0x30] sm:$0xff] %v188
      %247 = vst [vmem:[#allocation10 + $0x38] sm:$0xff] %v193
      %248 = vst [vmem:[#allocation10 + $0x40] sm:$0xff] %v198
      %249 = vst [vmem:[#allocation10 + $0x48] sm:$0xff] %v203
      %250 = vst [vmem:[#allocation10 + $0x50] sm:$0xff] %v208
      %251 = vst [vmem:[#allocation10 + $0x58] sm:$0xff] %v213
      %252 = vst [vmem:[#allocation10 + $0x60] sm:$0xff] %v218
      %253 = vst [vmem:[#allocation10 + $0x68] sm:$0xff] %v223
      %254 = vst [vmem:[#allocation10 + $0x70] sm:$0xff] %v228
      %255 = vst [vmem:[#allocation10 + $0x78] sm:$0xff] %v233
    $region21: #{tpu_custom_call.1} parent=1 // pred_fallthru
      _
    %p256 = scmp.gt.s32.totalorder 0, 0
    // Predicated region
    $region22: #{tpu_custom_call.1} parent=1 // pred_check
      %p257 = pneg %p256
    $region23: #{tpu_custom_call.1} parent=1 // pred_check_branch
      %259 = sbr.rel (%p257) target = $region25
    $region24: #{tpu_custom_call.1} parent=1 // pred_region
      %v260 = vld [vmem:[#allocation10] sm:$0xff]
      %v261 = vld [vmem:[#allocation10 + $0x8] sm:$0xff]
      %v262 = vld [vmem:[#allocation10 + $0x10] sm:$0xff]
      %v263 = vld [vmem:[#allocation10 + $0x18] sm:$0xff]
      %v264 = vld [vmem:[#allocation10 + $0x20] sm:$0xff]
      %v265 = vld [vmem:[#allocation10 + $0x28] sm:$0xff]
      %v266 = vld [vmem:[#allocation10 + $0x30] sm:$0xff]
      %v267 = vld [vmem:[#allocation10 + $0x38] sm:$0xff]
      %v268 = vld [vmem:[#allocation10 + $0x40] sm:$0xff]
      %v269 = vld [vmem:[#allocation10 + $0x48] sm:$0xff]
      %v270 = vld [vmem:[#allocation10 + $0x50] sm:$0xff]
      %v271 = vld [vmem:[#allocation10 + $0x58] sm:$0xff]
      %v272 = vld [vmem:[#allocation10 + $0x60] sm:$0xff]
      %v273 = vld [vmem:[#allocation10 + $0x68] sm:$0xff]
      %v274 = vld [vmem:[#allocation10 + $0x70] sm:$0xff]
      %v275 = vld [vmem:[#allocation10 + $0x78] sm:$0xff]
      %v276 = vadd.f32 %v260, %v158
      %v277 = vadd.f32 %v261, %v163
      %v278 = vadd.f32 %v262, %v168
      %v279 = vadd.f32 %v263, %v173
      %v280 = vadd.f32 %v264, %v178
      %v281 = vadd.f32 %v265, %v183
      %v282 = vadd.f32 %v266, %v188
      %v283 = vadd.f32 %v267, %v193
      %v284 = vadd.f32 %v268, %v198
      %v285 = vadd.f32 %v269, %v203
      %v286 = vadd.f32 %v270, %v208
      %v287 = vadd.f32 %v271, %v213
      %v288 = vadd.f32 %v272, %v218
      %v289 = vadd.f32 %v273, %v223
      %v290 = vadd.f32 %v274, %v228
      %v291 = vadd.f32 %v275, %v233
      %292 = vst [vmem:[#allocation10] sm:$0xff] %v276
      %293 = vst [vmem:[#allocation10 + $0x8] sm:$0xff] %v277
      %294 = vst [vmem:[#allocation10 + $0x10] sm:$0xff] %v278
      %295 = vst [vmem:[#allocation10 + $0x18] sm:$0xff] %v279
      %296 = vst [vmem:[#allocation10 + $0x20] sm:$0xff] %v280
      %297 = vst [vmem:[#allocation10 + $0x28] sm:$0xff] %v281
      %298 = vst [vmem:[#allocation10 + $0x30] sm:$0xff] %v282
      %299 = vst [vmem:[#allocation10 + $0x38] sm:$0xff] %v283
      %300 = vst [vmem:[#allocation10 + $0x40] sm:$0xff] %v284
      %301 = vst [vmem:[#allocation10 + $0x48] sm:$0xff] %v285
      %302 = vst [vmem:[#allocation10 + $0x50] sm:$0xff] %v286
      %303 = vst [vmem:[#allocation10 + $0x58] sm:$0xff] %v287
      %304 = vst [vmem:[#allocation10 + $0x60] sm:$0xff] %v288
      %305 = vst [vmem:[#allocation10 + $0x68] sm:$0xff] %v289
      %306 = vst [vmem:[#allocation10 + $0x70] sm:$0xff] %v290
      %307 = vst [vmem:[#allocation10 + $0x78] sm:$0xff] %v291
    $region25: #{tpu_custom_call.1} parent=1 // pred_fallthru
      _
    // Predicated region
    $region26: #{tpu_custom_call.1} parent=1 // pred_check
      _
    $region27: #{tpu_custom_call.1} parent=1 // pred_check_branch
      %309 = sbr.rel (0) target = $region29
    $region28: #{tpu_custom_call.1} parent=1 // pred_region
      %s310 = sld [smem:[#allocation3]]
      %s311 = sld [smem:[#allocation4]]
      %s312 = smul.u32 16, %s310
      %s314 = ssub.s32 2048, 2048
      %315 = vsyncadd [#allocation7], %s314
      %s316 = sadd.s32 %s311, %s312
      %s317 = smul.addr %s316, 128
      %s318 = scalar_lea.hbm %s4, %s317
      %s319 = sshll.u32 [#allocation10], 4
      %s320 = int_to_ptr.vmem [resolvable:$true] %s319
      %325 = dma.vmem_to_hbm [thread:$0]  %s320, 2048, %s318, [#allocation7], 128, 128, 8
    $region29: #{tpu_custom_call.1} parent=1 // pred_fallthru
      _
    // Predicated region
    $region30: #{tpu_custom_call.1} parent=1 // pred_check
      _
    $region31: #{tpu_custom_call.1} parent=1 // pred_check_branch
      %327 = sbr.rel (0) target = $region33
    $region32: #{tpu_custom_call.1} parent=1 // pred_region
      %328 = dma.done [#allocation7], 2048
    $region33: #{tpu_custom_call.1} parent=1 // pred_fallthru
      _
    %329 = vsyncpa [#allocation6], 1
    %330 = vsyncpa [#allocation9], 1
    %331 = vsyncpa [#allocation7], 1

</llo_original>
